<compile_context>
chip_gen: v5e
topology: v5e:2x2
jax: 0.10.0
libtpu: 0.0.40
codegen_flags: <defaults>
</compile_context>

<pallas_src>
import jax
import jax.numpy as jnp
from jax.experimental import pallas as pl
from jax.experimental.pallas import tpu as pltpu

S_DIM = 16              # state feature dim
R_DIM = 2               # desired_return dims (multi-objective)
C_DIM = R_DIM + 1       # conditioning dim (return + horizon)
HID = 64                # hidden width of the base MLP
N_ACT = 9               # 3 x 3 multi-discrete logits
B_TILE = 1024           # max batch rows per grid step (multiple of 8)


def _multidiscrete_head_kernel(state_ref, ret_ref, hor_ref,
                               ws_ref, bs_ref, wcr_ref, wch_ref, bc_ref,
                               w1_ref, b1_ref, w2_ref, b2_ref, gmat_ref,
                               out_ref):
    f32 = jnp.float32

    # state embedding: (T, 16) @ (16, 64) + bias -> sigmoid
    s_pre = jnp.dot(state_ref[...], ws_ref[...],
                    preferred_element_type=f32) + bs_ref[...]
    s_emb = jax.nn.sigmoid(s_pre)

    # conditioning embedding: return part via MXU dot, horizon part (K=1) as a
    # VPU broadcast outer product; the 0.1/0.01 scale is folded into wcr/wch.
    c_pre = (jnp.dot(ret_ref[...], wcr_ref[...], preferred_element_type=f32)
             + hor_ref[...] * wch_ref[...]
             + bc_ref[...])
    c_emb = jax.nn.sigmoid(c_pre)

    # base MLP: (s_emb * c_emb) -> ReLU hidden -> 9 logits
    prod = (s_emb * c_emb).astype(w1_ref.dtype)
    h = jnp.maximum(
        jnp.dot(prod, w1_ref[...], preferred_element_type=f32) + b1_ref[...],
        0.0)
    logits = jnp.dot(h.astype(w2_ref.dtype), w2_ref[...],
                     preferred_element_type=f32) + b2_ref[...]

    # grouped log-softmax over lanes [0:3], [3:6], [6:9] on the full (T, 9)
    # slab: global row max (exact per group), per-group sums via one (9, 9)
    # block-diagonal segment-sum matmul.
    m = jnp.max(logits, axis=-1, keepdims=True)
    e = jnp.exp(logits - m)
    gsum = jnp.dot(e, gmat_ref[...], preferred_element_type=f32)
    out_ref[...] = (logits - m) - jnp.log(gsum)


def pack_params(params, dtype=jnp.float32):
    """One-time (off the hot path) weight packing.  `dtype` controls the MXU
    operand dtype (use jnp.bfloat16 on v6e/v7x if ~1e-3 accuracy is ok)."""
    ws, bs, wc, bc, w1, b1, w2, b2 = params
    f32 = jnp.float32
    scale = jnp.array([0.1] * R_DIM + [0.01], f32)
    wc_scaled = wc.astype(f32) * scale[:, None]          # fold cond scale in
    gid = jnp.arange(N_ACT) // 3
    gmat = (gid[:, None] == gid[None, :]).astype(f32)    # (9, 9) segment-sum
    return dict(
        ws=ws.astype(dtype),
        bs=bs.reshape(1, HID).astype(f32),
        wcr=wc_scaled[:R_DIM].astype(dtype),             # (2, 64)
        wch=wc_scaled[R_DIM:].astype(dtype),              # (1, 64)
        bc=bc.reshape(1, HID).astype(f32),
        w1=w1.astype(dtype),
        b1=b1.reshape(1, HID).astype(f32),
        w2=w2.astype(dtype),
        b2=b2.reshape(1, N_ACT).astype(f32),
        gmat=gmat,
    )


@jax.jit
def multidiscrete_head(state, desired_return, desired_horizon, packed):
    b = state.shape[0]
    act_dtype = packed["ws"].dtype
    state = state.astype(act_dtype)
    ret = desired_return.astype(act_dtype)
    hor = desired_horizon.astype(act_dtype)

    # batch tile: multiple of 8, capped at B_TILE, and chosen so any batch
    # >= 16 rows gets at least 2 grid steps (both v7x TensorCores busy).
    tile = min(B_TILE, max(8, pl.cdiv(b, 16) * 8))
    b_pad = pl.cdiv(b, tile) * tile
    if b_pad != b:
        pad = ((0, b_pad - b), (0, 0))
        state = jnp.pad(state, pad)
        ret = jnp.pad(ret, pad)
        hor = jnp.pad(hor, pad)

    def row_spec(d):
        return pl.BlockSpec((tile, d), lambda i: (i, 0))

    def full_spec(arr):
        # constant-index weight blocks: Pallas keeps the resident copy across
        # grid steps (total weight footprint well under 100 KiB of VMEM)
        return pl.BlockSpec(arr.shape, lambda i, _n=arr.ndim: (0,) * _n)

    weights = (packed["ws"], packed["bs"], packed["wcr"], packed["wch"],
               packed["bc"], packed["w1"], packed["b1"], packed["w2"],
               packed["b2"], packed["gmat"])

    out9 = pl.pallas_call(
        _multidiscrete_head_kernel,
        out_shape=jax.ShapeDtypeStruct((b_pad, N_ACT), jnp.float32),
        grid=(b_pad // tile,),
        in_specs=[row_spec(S_DIM), row_spec(R_DIM), row_spec(1)]
                 + [full_spec(w) for w in weights],
        out_specs=pl.BlockSpec((tile, N_ACT), lambda i: (i, 0)),
        compiler_params=pltpu.CompilerParams(
            dimension_semantics=("parallel",),        # shards across v7x's 2 TCs
            vmem_limit_bytes=32 * 1024 * 1024),       # explicit; safe on v5e-v7x
    )(state, ret, hor, *weights)

    # drop padding rows; reshape(b, 3, 3) is free layout plumbing in the wrapper
    return out9[:b].reshape(b, 3, 3)


def reference(state, desired_return, desired_horizon, params):
    ws, bs, wc, bc, w1, b1, w2, b2 = params
    scale = jnp.array([0.1] * R_DIM + [0.01], dtype=jnp.float32)
    cond = jnp.concatenate([desired_return, desired_horizon], axis=-1) * scale
    s = jax.nn.sigmoid(state @ ws + bs)
    c = jax.nn.sigmoid(cond @ wc + bc)
    h = jax.nn.relu((s * c) @ w1 + b1)
    logits = h @ w2 + b2
    x = logits.reshape(-1, 3, 3)
    return jax.nn.log_softmax(x, axis=2)


def init_params(key):
    ks = jax.random.split(key, 8)
    scale = 0.1
    ws = scale * jax.random.normal(ks[0], (S_DIM, HID), jnp.float32)
    bs = scale * jax.random.normal(ks[1], (1, HID), jnp.float32)
    wc = scale * jax.random.normal(ks[2], (C_DIM, HID), jnp.float32)
    bc = scale * jax.random.normal(ks[3], (1, HID), jnp.float32)
    w1 = scale * jax.random.normal(ks[4], (HID, HID), jnp.float32)
    b1 = scale * jax.random.normal(ks[5], (1, HID), jnp.float32)
    w2 = scale * jax.random.normal(ks[6], (HID, N_ACT), jnp.float32)
    b2 = scale * jax.random.normal(ks[7], (1, N_ACT), jnp.float32)
    return (ws, bs, wc, bc, w1, b1, w2, b2)


if __name__ == "__main__":
    key = jax.random.PRNGKey(0)
    k_p, k_s, k_r, k_h = jax.random.split(key, 4)

    B = 10   # deliberately not a multiple of 8/tile: exercises the padding path
    params = init_params(k_p)
    packed = pack_params(params)                 # one-time, off the hot path
    state = jax.random.normal(k_s, (B, S_DIM), jnp.float32)
    desired_return = jax.random.normal(k_r, (B, R_DIM), jnp.float32)
    desired_horizon = jax.random.uniform(k_h, (B, 1), jnp.float32,
                                         minval=1.0, maxval=50.0)

    out = multidiscrete_head(state, desired_return, desired_horizon, packed)
    out = jax.block_until_ready(out)

    ref = reference(state, desired_return, desired_horizon, params)
    assert out.shape == (B, 3, 3)
    assert jnp.allclose(out, ref, atol=1e-5, rtol=1e-5), \
        f"max abs err {jnp.max(jnp.abs(out - ref))}"
    # log_softmax sanity: each row of 3 logits sums to 1 after exp
    assert jnp.allclose(jnp.sum(jnp.exp(out), axis=-1), 1.0, atol=1e-5)

    print("KERNEL_OK")
</pallas_src>

<mosaic_0001>
module attributes {stable_mosaic.version = 11 : i64} {
  func.func @_multidiscrete_head_kernel(%arg0: i32, %arg1: memref<8x16xf32, #tpu.memory_space<vmem>>, %arg2: memref<8x2xf32, #tpu.memory_space<vmem>>, %arg3: memref<8x1xf32, #tpu.memory_space<vmem>>, %arg4: memref<16x64xf32, #tpu.memory_space<vmem>>, %arg5: memref<1x64xf32, #tpu.memory_space<vmem>>, %arg6: memref<2x64xf32, #tpu.memory_space<vmem>>, %arg7: memref<1x64xf32, #tpu.memory_space<vmem>>, %arg8: memref<1x64xf32, #tpu.memory_space<vmem>>, %arg9: memref<64x64xf32, #tpu.memory_space<vmem>>, %arg10: memref<1x64xf32, #tpu.memory_space<vmem>>, %arg11: memref<64x9xf32, #tpu.memory_space<vmem>>, %arg12: memref<1x9xf32, #tpu.memory_space<vmem>>, %arg13: memref<9x9xf32, #tpu.memory_space<vmem>>, %arg14: memref<8x9xf32, #tpu.memory_space<vmem>>) attributes {dimension_semantics = [#tpu.dimension_semantics<parallel>], iteration_bounds = array<i64: 2>, scalar_prefetch = 0 : i64, scratch_operands = 0 : i64, tpu.core_type = #tpu.core_type<tc>, window_params = [{transform_indices = @transform_0, window_bounds = array<i64: 8, 16>}, {transform_indices = @transform_1, window_bounds = array<i64: 8, 2>}, {transform_indices = @transform_2, window_bounds = array<i64: 8, 1>}, {pipeline_mode = #tpu.pipeline_mode<synchronous>, transform_indices = @transform_3, window_bounds = array<i64: 16, 64>}, {pipeline_mode = #tpu.pipeline_mode<synchronous>, transform_indices = @transform_4, window_bounds = array<i64: 1, 64>}, {pipeline_mode = #tpu.pipeline_mode<synchronous>, transform_indices = @transform_5, window_bounds = array<i64: 2, 64>}, {pipeline_mode = #tpu.pipeline_mode<synchronous>, transform_indices = @transform_6, window_bounds = array<i64: 1, 64>}, {pipeline_mode = #tpu.pipeline_mode<synchronous>, transform_indices = @transform_7, window_bounds = array<i64: 1, 64>}, {pipeline_mode = #tpu.pipeline_mode<synchronous>, transform_indices = @transform_8, window_bounds = array<i64: 64, 64>}, {pipeline_mode = #tpu.pipeline_mode<synchronous>, transform_indices = @transform_9, window_bounds = array<i64: 1, 64>}, {pipeline_mode = #tpu.pipeline_mode<synchronous>, transform_indices = @transform_10, window_bounds = array<i64: 64, 9>}, {pipeline_mode = #tpu.pipeline_mode<synchronous>, transform_indices = @transform_11, window_bounds = array<i64: 1, 9>}, {pipeline_mode = #tpu.pipeline_mode<synchronous>, transform_indices = @transform_12, window_bounds = array<i64: 9, 9>}, {transform_indices = @transform_13, window_bounds = array<i64: 8, 9>}]} {
    %c0 = arith.constant 0 : index
    %c0_0 = arith.constant 0 : index
    %0 = vector.load %arg1[%c0, %c0_0] : memref<8x16xf32, #tpu.memory_space<vmem>>, vector<8x16xf32>
    %c0_1 = arith.constant 0 : index
    %c0_2 = arith.constant 0 : index
    %1 = vector.load %arg4[%c0_1, %c0_2] : memref<16x64xf32, #tpu.memory_space<vmem>>, vector<16x64xf32>
    %cst = arith.constant dense<0.000000e+00> : vector<8x64xf32>
    %2 = tpu.matmul %0, %1, %cst {dimension_numbers = #tpu.dot_dimension_numbers<[1], [0], [0], [1], [0, 0, 1, 1], [], []>} : vector<8x16xf32>, vector<16x64xf32>, vector<8x64xf32> -> vector<8x64xf32>
    %c0_3 = arith.constant 0 : index
    %c0_4 = arith.constant 0 : index
    %3 = vector.load %arg5[%c0_3, %c0_4] : memref<1x64xf32, #tpu.memory_space<vmem>>, vector<1x64xf32>
    %4 = vector.broadcast %3 : vector<1x64xf32> to vector<8x64xf32>
    %5 = arith.addf %2, %4 : vector<8x64xf32>
    %6 = arith.negf %5 : vector<8x64xf32>
    %7 = math.exp %6 : vector<8x64xf32>
    %cst_5 = arith.constant 1.000000e+00 : f32
    %8 = vector.broadcast %cst_5 : f32 to vector<8x64xf32>
    %9 = arith.addf %8, %7 : vector<8x64xf32>
    %10 = arith.divf %8, %9 : vector<8x64xf32>
    %c0_6 = arith.constant 0 : index
    %c0_7 = arith.constant 0 : index
    %11 = vector.load %arg2[%c0_6, %c0_7] : memref<8x2xf32, #tpu.memory_space<vmem>>, vector<8x2xf32>
    %c0_8 = arith.constant 0 : index
    %c0_9 = arith.constant 0 : index
    %12 = vector.load %arg6[%c0_8, %c0_9] : memref<2x64xf32, #tpu.memory_space<vmem>>, vector<2x64xf32>
    %cst_10 = arith.constant dense<0.000000e+00> : vector<8x64xf32>
    %13 = tpu.matmul %11, %12, %cst_10 {dimension_numbers = #tpu.dot_dimension_numbers<[1], [0], [0], [1], [0, 0, 1, 1], [], []>} : vector<8x2xf32>, vector<2x64xf32>, vector<8x64xf32> -> vector<8x64xf32>
    %c0_11 = arith.constant 0 : index
    %c0_12 = arith.constant 0 : index
    %14 = vector.load %arg3[%c0_11, %c0_12] : memref<8x1xf32, #tpu.memory_space<vmem>>, vector<8x1xf32>
    %c0_13 = arith.constant 0 : index
    %c0_14 = arith.constant 0 : index
    %15 = vector.load %arg7[%c0_13, %c0_14] : memref<1x64xf32, #tpu.memory_space<vmem>>, vector<1x64xf32>
    %16 = vector.broadcast %14 : vector<8x1xf32> to vector<8x64xf32>
    %17 = vector.broadcast %15 : vector<1x64xf32> to vector<8x64xf32>
    %18 = arith.mulf %16, %17 : vector<8x64xf32>
    %19 = arith.addf %13, %18 : vector<8x64xf32>
    %c0_15 = arith.constant 0 : index
    %c0_16 = arith.constant 0 : index
    %20 = vector.load %arg8[%c0_15, %c0_16] : memref<1x64xf32, #tpu.memory_space<vmem>>, vector<1x64xf32>
    %21 = vector.broadcast %20 : vector<1x64xf32> to vector<8x64xf32>
    %22 = arith.addf %19, %21 : vector<8x64xf32>
    %23 = arith.negf %22 : vector<8x64xf32>
    %24 = math.exp %23 : vector<8x64xf32>
    %cst_17 = arith.constant 1.000000e+00 : f32
    %25 = vector.broadcast %cst_17 : f32 to vector<8x64xf32>
    %26 = arith.addf %25, %24 : vector<8x64xf32>
    %27 = arith.divf %25, %26 : vector<8x64xf32>
    %28 = arith.mulf %10, %27 : vector<8x64xf32>
    %c0_18 = arith.constant 0 : index
    %c0_19 = arith.constant 0 : index
    %29 = vector.load %arg9[%c0_18, %c0_19] : memref<64x64xf32, #tpu.memory_space<vmem>>, vector<64x64xf32>
    %cst_20 = arith.constant dense<0.000000e+00> : vector<8x64xf32>
    %30 = tpu.matmul %28, %29, %cst_20 {dimension_numbers = #tpu.dot_dimension_numbers<[1], [0], [0], [1], [0, 0, 1, 1], [], []>} : vector<8x64xf32>, vector<64x64xf32>, vector<8x64xf32> -> vector<8x64xf32>
    %c0_21 = arith.constant 0 : index
    %c0_22 = arith.constant 0 : index
    %31 = vector.load %arg10[%c0_21, %c0_22] : memref<1x64xf32, #tpu.memory_space<vmem>>, vector<1x64xf32>
    %32 = vector.broadcast %31 : vector<1x64xf32> to vector<8x64xf32>
    %33 = arith.addf %30, %32 : vector<8x64xf32>
    %cst_23 = arith.constant 0.000000e+00 : f32
    %34 = vector.broadcast %cst_23 : f32 to vector<8x64xf32>
    %35 = arith.maximumf %33, %34 : vector<8x64xf32>
    %c0_24 = arith.constant 0 : index
    %c0_25 = arith.constant 0 : index
    %36 = vector.load %arg11[%c0_24, %c0_25] : memref<64x9xf32, #tpu.memory_space<vmem>>, vector<64x9xf32>
    %cst_26 = arith.constant dense<0.000000e+00> : vector<8x9xf32>
    %37 = tpu.matmul %35, %36, %cst_26 {dimension_numbers = #tpu.dot_dimension_numbers<[1], [0], [0], [1], [0, 0, 1, 1], [], []>} : vector<8x64xf32>, vector<64x9xf32>, vector<8x9xf32> -> vector<8x9xf32>
    %c0_27 = arith.constant 0 : index
    %c0_28 = arith.constant 0 : index
    %38 = vector.load %arg12[%c0_27, %c0_28] : memref<1x9xf32, #tpu.memory_space<vmem>>, vector<1x9xf32>
    %39 = vector.broadcast %38 : vector<1x9xf32> to vector<8x9xf32>
    %40 = arith.addf %37, %39 : vector<8x9xf32>
    %cst_29 = arith.constant dense<0xFF800000> : vector<8xf32>
    %41 = vector.multi_reduction <maximumf>, %40, %cst_29 [1] : vector<8x9xf32> to vector<8xf32>
    %42 = vector.shape_cast %41 : vector<8xf32> to vector<8x1xf32>
    %43 = vector.broadcast %42 : vector<8x1xf32> to vector<8x9xf32>
    %44 = arith.subf %40, %43 : vector<8x9xf32>
    %45 = math.exp %44 : vector<8x9xf32>
    %c0_30 = arith.constant 0 : index
    %c0_31 = arith.constant 0 : index
    %46 = vector.load %arg13[%c0_30, %c0_31] : memref<9x9xf32, #tpu.memory_space<vmem>>, vector<9x9xf32>
    %cst_32 = arith.constant dense<0.000000e+00> : vector<8x9xf32>
    %47 = tpu.matmul %45, %46, %cst_32 {dimension_numbers = #tpu.dot_dimension_numbers<[1], [0], [0], [1], [0, 0, 1, 1], [], []>} : vector<8x9xf32>, vector<9x9xf32>, vector<8x9xf32> -> vector<8x9xf32>
    %48 = vector.broadcast %42 : vector<8x1xf32> to vector<8x9xf32>
    %49 = arith.subf %40, %48 : vector<8x9xf32>
    %50 = math.log %47 : vector<8x9xf32>
    %51 = arith.subf %49, %50 : vector<8x9xf32>
    %c0_33 = arith.constant 0 : index
    %c0_34 = arith.constant 0 : index
    %52 = vector.load %arg14[%c0_33, %c0_34] : memref<8x9xf32, #tpu.memory_space<vmem>>, vector<8x9xf32>
    tpu.vector_store %arg14[%c0_33, %c0_34], %51 {strides = array<i32>} : memref<8x9xf32, #tpu.memory_space<vmem>>, vector<8x9xf32>,
    return
  }
  func.func @transform_0(%arg0: i32) -> (i32, i32) {
    %c0_i32 = arith.constant 0 : i32
    %c0_i32_0 = arith.constant 0 : i32
    return %arg0, %c0_i32 : i32, i32
  }
  func.func @transform_1(%arg0: i32) -> (i32, i32) {
    %c0_i32 = arith.constant 0 : i32
    %c0_i32_0 = arith.constant 0 : i32
    return %arg0, %c0_i32 : i32, i32
  }
  func.func @transform_2(%arg0: i32) -> (i32, i32) {
    %c0_i32 = arith.constant 0 : i32
    %c0_i32_0 = arith.constant 0 : i32
    return %arg0, %c0_i32 : i32, i32
  }
  func.func @transform_3(%arg0: i32) -> (i32, i32) {
    %c0_i32 = arith.constant 0 : i32
    %c0_i32_0 = arith.constant 0 : i32
    %c0_i32_1 = arith.constant 0 : i32
    return %c0_i32, %c0_i32_0 : i32, i32
  }
  func.func @transform_4(%arg0: i32) -> (i32, i32) {
    %c0_i32 = arith.constant 0 : i32
    %c0_i32_0 = arith.constant 0 : i32
    %c0_i32_1 = arith.constant 0 : i32
    return %c0_i32, %c0_i32_0 : i32, i32
  }
  func.func @transform_5(%arg0: i32) -> (i32, i32) {
    %c0_i32 = arith.constant 0 : i32
    %c0_i32_0 = arith.constant 0 : i32
    %c0_i32_1 = arith.constant 0 : i32
    return %c0_i32, %c0_i32_0 : i32, i32
  }
  func.func @transform_6(%arg0: i32) -> (i32, i32) {
    %c0_i32 = arith.constant 0 : i32
    %c0_i32_0 = arith.constant 0 : i32
    %c0_i32_1 = arith.constant 0 : i32
    return %c0_i32, %c0_i32_0 : i32, i32
  }
  func.func @transform_7(%arg0: i32) -> (i32, i32) {
    %c0_i32 = arith.constant 0 : i32
    %c0_i32_0 = arith.constant 0 : i32
    %c0_i32_1 = arith.constant 0 : i32
    return %c0_i32, %c0_i32_0 : i32, i32
  }
  func.func @transform_8(%arg0: i32) -> (i32, i32) {
    %c0_i32 = arith.constant 0 : i32
    %c0_i32_0 = arith.constant 0 : i32
    %c0_i32_1 = arith.constant 0 : i32
    return %c0_i32, %c0_i32_0 : i32, i32
  }
  func.func @transform_9(%arg0: i32) -> (i32, i32) {
    %c0_i32 = arith.constant 0 : i32
    %c0_i32_0 = arith.constant 0 : i32
    %c0_i32_1 = arith.constant 0 : i32
    return %c0_i32, %c0_i32_0 : i32, i32
  }
  func.func @transform_10(%arg0: i32) -> (i32, i32) {
    %c0_i32 = arith.constant 0 : i32
    %c0_i32_0 = arith.constant 0 : i32
    %c0_i32_1 = arith.constant 0 : i32
    return %c0_i32, %c0_i32_0 : i32, i32
  }
  func.func @transform_11(%arg0: i32) -> (i32, i32) {
    %c0_i32 = arith.constant 0 : i32
    %c0_i32_0 = arith.constant 0 : i32
    %c0_i32_1 = arith.constant 0 : i32
    return %c0_i32, %c0_i32_0 : i32, i32
  }
  func.func @transform_12(%arg0: i32) -> (i32, i32) {
    %c0_i32 = arith.constant 0 : i32
    %c0_i32_0 = arith.constant 0 : i32
    %c0_i32_1 = arith.constant 0 : i32
    return %c0_i32, %c0_i32_0 : i32, i32
  }
  func.func @transform_13(%arg0: i32) -> (i32, i32) {
    %c0_i32 = arith.constant 0 : i32
    %c0_i32_0 = arith.constant 0 : i32
    return %arg0, %c0_i32 : i32, i32
  }
}

</mosaic_0001>

<llo_original>
// kernel: multidiscrete_head.1
$region0: #{multidiscrete_head.1}
  #allocation0 [shape = 'u32[]', space=smem, size = 0x4, offset = 0x4, fixed_abs, tag = 'smem constant byte address 0x4 - core index']
  #allocation1 [shape = 'u32[72,128]{1,0:T(1,128)}', space=vmem, size = 0x9000, scoped, tag = 'internal scratch']
  %s0 = inlined_call_operand.vmem [shape: f32[16,16], index: 0, kind: input, shape index: {}]
  %s1 = inlined_call_operand.vmem [shape: f32[16,2], index: 1, kind: input, shape index: {}]
  %s2 = inlined_call_operand.vmem [shape: f32[16,1], index: 2, kind: input, shape index: {}]
  %s3 = inlined_call_operand.vmem [shape: f32[16,64], index: 3, kind: input, shape index: {}]
  %s4 = inlined_call_operand.vmem [shape: f32[1,64], index: 4, kind: input, shape index: {}]
  %s5 = inlined_call_operand.vmem [shape: f32[2,64], index: 5, kind: input, shape index: {}]
  %s6 = inlined_call_operand.vmem [shape: f32[1,64], index: 6, kind: input, shape index: {}]
  %s7 = inlined_call_operand.vmem [shape: f32[1,64], index: 7, kind: input, shape index: {}]
  %s8 = inlined_call_operand.vmem [shape: f32[64,64], index: 8, kind: input, shape index: {}]
  %s9 = inlined_call_operand.vmem [shape: f32[1,64], index: 9, kind: input, shape index: {}]
  %s10 = inlined_call_operand.vmem [shape: f32[64,9], index: 10, kind: input, shape index: {}]
  %s11 = inlined_call_operand.vmem [shape: f32[1,9], index: 11, kind: input, shape index: {}]
  %s12 = inlined_call_operand.vmem [shape: f32[9,9], index: 12, kind: input, shape index: {}]
  %s13 = inlined_call_operand.vmem [shape: f32[16,9], index: 13, kind: output, shape index: {}]
  %s14 = sld [smem:[#allocation0]]
  $region85: #{multidiscrete_head.1} parent=0
    _
  %s16 = ssub.s32 1, %s14
  %s17 = scalar_select 0, %s16, %s14
  loop: start=0, step=1, limit=4
  $region2: #{multidiscrete_head.1} parent=0 // loop_pre_header
    _
  $region3: #{multidiscrete_head.1} parent=0 // loop_header
    %s19 = sphi 0, %s23
    %p20 = scmp.ge.s32.totalorder %s19, 4
    %s29 = sphi 0, %s31
    %s32 = sphi 0, %s29
    %s33 = sphi 0, %s32
    %s49 = sphi 0, %s33
    %s55 = sphi 0, %s57
    %s58 = sphi 0, %s55
    %s59 = sphi 0, %s58
    %s75 = sphi 0, %s59
    %s81 = sphi 0, %s83
    %s84 = sphi 0, %s81
    %s85 = sphi 0, %s84
    %s101 = sphi 0, %s85
    %s105 = sphi 0, %s105
    %s107 = sphi 0, %s105
    %s108 = sphi 0, %s107
    %s122 = sphi 0, %s108
    %s126 = sphi 0, %s126
    %s128 = sphi 0, %s126
    %s129 = sphi 0, %s128
    %s143 = sphi 0, %s129
    %s147 = sphi 0, %s147
    %s149 = sphi 0, %s147
    %s150 = sphi 0, %s149
    %s164 = sphi 0, %s150
    %s168 = sphi 0, %s168
    %s170 = sphi 0, %s168
    %s171 = sphi 0, %s170
    %s185 = sphi 0, %s171
    %s189 = sphi 0, %s189
    %s191 = sphi 0, %s189
    %s192 = sphi 0, %s191
    %s206 = sphi 0, %s192
    %s210 = sphi 0, %s210
    %s212 = sphi 0, %s210
    %s213 = sphi 0, %s212
    %s227 = sphi 0, %s213
    %s231 = sphi 0, %s231
    %s233 = sphi 0, %s231
    %s234 = sphi 0, %s233
    %s248 = sphi 0, %s234
    %s252 = sphi 0, %s252
    %s254 = sphi 0, %s252
    %s255 = sphi 0, %s254
    %s269 = sphi 0, %s255
    %s273 = sphi 0, %s273
    %s275 = sphi 0, %s273
    %s276 = sphi 0, %s275
    %s290 = sphi 0, %s276
    %s294 = sphi 0, %s294
    %s296 = sphi 0, %s294
    %s297 = sphi 0, %s296
    %s311 = sphi 0, %s297
    %s317 = sphi 0, %s319
    %s320 = sphi 0, %s317
    %s321 = sphi 0, %s320
    %s337 = sphi 0, %s321
  $region4: #{multidiscrete_head.1} parent=0 // loop_header_branch
    %22 = sbr.rel (%p20) target = $region8
  $region5: #{multidiscrete_head.1} parent=0 // loop_body
    %s24 = ssub.s32 %s19, 1
    %s25 = ssub.s32 %s19, 2
    %s26 = sadd.s32 %s19, 1
    %s27 = ssub.s32 %s19, %s26
    %p28 = scmp.eq.s32.totalorder %s27, 0
    %s30 = sadd.s32 %s29, 1
    %s31 = scalar_select %p28, %s29, %s30
    %p34 = pneg %p28
    %p35 = scmp.eq.s32.totalorder %s19, 1
    %p36 = por %p34, %p35
    %p37 = scmp.ne.s32.totalorder %s29, %s32
    %p38 = scmp.eq.s32.totalorder %s19, 0
    %p39 = por %p37, %p38
    %p40 = scmp.ne.s32.totalorder %s29, %s32
    %p41 = scmp.eq.s32.totalorder %s24, 1
    %p42 = por %p40, %p41
    %p43 = scmp.ne.s32.totalorder %s32, %s33
    %p44 = scmp.eq.s32.totalorder %s24, 0
    %p45 = por %p43, %p44
    %p46 = scmp.ne.s32.totalorder %s32, %s33
    %p47 = scmp.eq.s32.totalorder %s25, 1
    %p48 = por %p46, %p47
    %p50 = scmp.ne.s32.totalorder %s33, %s49
    %p51 = scmp.eq.s32.totalorder %s25, 0
    %p52 = por %p50, %p51
    %s53 = ssub.s32 %s19, %s26
    %p54 = scmp.eq.s32.totalorder %s53, 0
    %s56 = sadd.s32 %s55, 1
    %s57 = scalar_select %p54, %s55, %s56
    %p60 = pneg %p54
    %p61 = scmp.eq.s32.totalorder %s19, 1
    %p62 = por %p60, %p61
    %p63 = scmp.ne.s32.totalorder %s55, %s58
    %p64 = scmp.eq.s32.totalorder %s19, 0
    %p65 = por %p63, %p64
    %p66 = scmp.ne.s32.totalorder %s55, %s58
    %p67 = scmp.eq.s32.totalorder %s24, 1
    %p68 = por %p66, %p67
    %p69 = scmp.ne.s32.totalorder %s58, %s59
    %p70 = scmp.eq.s32.totalorder %s24, 0
    %p71 = por %p69, %p70
    %p72 = scmp.ne.s32.totalorder %s58, %s59
    %p73 = scmp.eq.s32.totalorder %s25, 1
    %p74 = por %p72, %p73
    %p76 = scmp.ne.s32.totalorder %s59, %s75
    %p77 = scmp.eq.s32.totalorder %s25, 0
    %p78 = por %p76, %p77
    %s79 = ssub.s32 %s19, %s26
    %p80 = scmp.eq.s32.totalorder %s79, 0
    %s82 = sadd.s32 %s81, 1
    %s83 = scalar_select %p80, %s81, %s82
    %p86 = pneg %p80
    %p87 = scmp.eq.s32.totalorder %s19, 1
    %p88 = por %p86, %p87
    %p89 = scmp.ne.s32.totalorder %s81, %s84
    %p90 = scmp.eq.s32.totalorder %s19, 0
    %p91 = por %p89, %p90
    %p92 = scmp.ne.s32.totalorder %s81, %s84
    %p93 = scmp.eq.s32.totalorder %s24, 1
    %p94 = por %p92, %p93
    %p95 = scmp.ne.s32.totalorder %s84, %s85
    %p96 = scmp.eq.s32.totalorder %s24, 0
    %p97 = por %p95, %p96
    %p98 = scmp.ne.s32.totalorder %s84, %s85
    %p99 = scmp.eq.s32.totalorder %s25, 1
    %p100 = por %p98, %p99
    %p102 = scmp.ne.s32.totalorder %s85, %s101
    %p103 = scmp.eq.s32.totalorder %s25, 0
    %p104 = por %p102, %p103
    %s106 = sadd.s32 %s105, 1
    %p109 = scmp.eq.s32.totalorder %s19, 1
    %p110 = scmp.ne.s32.totalorder %s105, %s107
    %p111 = scmp.eq.s32.totalorder %s19, 0
    %p112 = por %p110, %p111
    %p113 = scmp.ne.s32.totalorder %s105, %s107
    %p114 = scmp.eq.s32.totalorder %s24, 1
    %p115 = por %p113, %p114
    %p116 = scmp.ne.s32.totalorder %s107, %s108
    %p117 = scmp.eq.s32.totalorder %s24, 0
    %p118 = por %p116, %p117
    %p119 = scmp.ne.s32.totalorder %s107, %s108
    %p120 = scmp.eq.s32.totalorder %s25, 1
    %p121 = por %p119, %p120
    %p123 = scmp.ne.s32.totalorder %s108, %s122
    %p124 = scmp.eq.s32.totalorder %s25, 0
    %p125 = por %p123, %p124
    %s127 = sadd.s32 %s126, 1
    %p130 = scmp.eq.s32.totalorder %s19, 1
    %p131 = scmp.ne.s32.totalorder %s126, %s128
    %p132 = scmp.eq.s32.totalorder %s19, 0
    %p133 = por %p131, %p132
    %p134 = scmp.ne.s32.totalorder %s126, %s128
    %p135 = scmp.eq.s32.totalorder %s24, 1
    %p136 = por %p134, %p135
    %p137 = scmp.ne.s32.totalorder %s128, %s129
    %p138 = scmp.eq.s32.totalorder %s24, 0
    %p139 = por %p137, %p138
    %p140 = scmp.ne.s32.totalorder %s128, %s129
    %p141 = scmp.eq.s32.totalorder %s25, 1
    %p142 = por %p140, %p141
    %p144 = scmp.ne.s32.totalorder %s129, %s143
    %p145 = scmp.eq.s32.totalorder %s25, 0
    %p146 = por %p144, %p145
    %s148 = sadd.s32 %s147, 1
    %p151 = scmp.eq.s32.totalorder %s19, 1
    %p152 = scmp.ne.s32.totalorder %s147, %s149
    %p153 = scmp.eq.s32.totalorder %s19, 0
    %p154 = por %p152, %p153
    %p155 = scmp.ne.s32.totalorder %s147, %s149
    %p156 = scmp.eq.s32.totalorder %s24, 1
    %p157 = por %p155, %p156
    %p158 = scmp.ne.s32.totalorder %s149, %s150
    %p159 = scmp.eq.s32.totalorder %s24, 0
    %p160 = por %p158, %p159
    %p161 = scmp.ne.s32.totalorder %s149, %s150
    %p162 = scmp.eq.s32.totalorder %s25, 1
    %p163 = por %p161, %p162
    %p165 = scmp.ne.s32.totalorder %s150, %s164
    %p166 = scmp.eq.s32.totalorder %s25, 0
    %p167 = por %p165, %p166
    %s169 = sadd.s32 %s168, 1
    %p172 = scmp.eq.s32.totalorder %s19, 1
    %p173 = scmp.ne.s32.totalorder %s168, %s170
    %p174 = scmp.eq.s32.totalorder %s19, 0
    %p175 = por %p173, %p174
    %p176 = scmp.ne.s32.totalorder %s168, %s170
    %p177 = scmp.eq.s32.totalorder %s24, 1
    %p178 = por %p176, %p177
    %p179 = scmp.ne.s32.totalorder %s170, %s171
    %p180 = scmp.eq.s32.totalorder %s24, 0
    %p181 = por %p179, %p180
    %p182 = scmp.ne.s32.totalorder %s170, %s171
    %p183 = scmp.eq.s32.totalorder %s25, 1
    %p184 = por %p182, %p183
    %p186 = scmp.ne.s32.totalorder %s171, %s185
    %p187 = scmp.eq.s32.totalorder %s25, 0
    %p188 = por %p186, %p187
    %s190 = sadd.s32 %s189, 1
    %p193 = scmp.eq.s32.totalorder %s19, 1
    %p194 = scmp.ne.s32.totalorder %s189, %s191
    %p195 = scmp.eq.s32.totalorder %s19, 0
    %p196 = por %p194, %p195
    %p197 = scmp.ne.s32.totalorder %s189, %s191
    %p198 = scmp.eq.s32.totalorder %s24, 1
    %p199 = por %p197, %p198
    %p200 = scmp.ne.s32.totalorder %s191, %s192
    %p201 = scmp.eq.s32.totalorder %s24, 0
    %p202 = por %p200, %p201
    %p203 = scmp.ne.s32.totalorder %s191, %s192
    %p204 = scmp.eq.s32.totalorder %s25, 1
    %p205 = por %p203, %p204
    %p207 = scmp.ne.s32.totalorder %s192, %s206
    %p208 = scmp.eq.s32.totalorder %s25, 0
    %p209 = por %p207, %p208
    %s211 = sadd.s32 %s210, 1
    %p214 = scmp.eq.s32.totalorder %s19, 1
    %p215 = scmp.ne.s32.totalorder %s210, %s212
    %p216 = scmp.eq.s32.totalorder %s19, 0
    %p217 = por %p215, %p216
    %p218 = scmp.ne.s32.totalorder %s210, %s212
    %p219 = scmp.eq.s32.totalorder %s24, 1
    %p220 = por %p218, %p219
    %p221 = scmp.ne.s32.totalorder %s212, %s213
    %p222 = scmp.eq.s32.totalorder %s24, 0
    %p223 = por %p221, %p222
    %p224 = scmp.ne.s32.totalorder %s212, %s213
    %p225 = scmp.eq.s32.totalorder %s25, 1
    %p226 = por %p224, %p225
    %p228 = scmp.ne.s32.totalorder %s213, %s227
    %p229 = scmp.eq.s32.totalorder %s25, 0
    %p230 = por %p228, %p229
    %s232 = sadd.s32 %s231, 1
    %p235 = scmp.eq.s32.totalorder %s19, 1
    %p236 = scmp.ne.s32.totalorder %s231, %s233
    %p237 = scmp.eq.s32.totalorder %s19, 0
    %p238 = por %p236, %p237
    %p239 = scmp.ne.s32.totalorder %s231, %s233
    %p240 = scmp.eq.s32.totalorder %s24, 1
    %p241 = por %p239, %p240
    %p242 = scmp.ne.s32.totalorder %s233, %s234
    %p243 = scmp.eq.s32.totalorder %s24, 0
    %p244 = por %p242, %p243
    %p245 = scmp.ne.s32.totalorder %s233, %s234
    %p246 = scmp.eq.s32.totalorder %s25, 1
    %p247 = por %p245, %p246
    %p249 = scmp.ne.s32.totalorder %s234, %s248
    %p250 = scmp.eq.s32.totalorder %s25, 0
    %p251 = por %p249, %p250
    %s253 = sadd.s32 %s252, 1
    %p256 = scmp.eq.s32.totalorder %s19, 1
    %p257 = scmp.ne.s32.totalorder %s252, %s254
    %p258 = scmp.eq.s32.totalorder %s19, 0
    %p259 = por %p257, %p258
    %p260 = scmp.ne.s32.totalorder %s252, %s254
    %p261 = scmp.eq.s32.totalorder %s24, 1
    %p262 = por %p260, %p261
    %p263 = scmp.ne.s32.totalorder %s254, %s255
    %p264 = scmp.eq.s32.totalorder %s24, 0
    %p265 = por %p263, %p264
    %p266 = scmp.ne.s32.totalorder %s254, %s255
    %p267 = scmp.eq.s32.totalorder %s25, 1
    %p268 = por %p266, %p267
    %p270 = scmp.ne.s32.totalorder %s255, %s269
    %p271 = scmp.eq.s32.totalorder %s25, 0
    %p272 = por %p270, %p271
    %s274 = sadd.s32 %s273, 1
    %p277 = scmp.eq.s32.totalorder %s19, 1
    %p278 = scmp.ne.s32.totalorder %s273, %s275
    %p279 = scmp.eq.s32.totalorder %s19, 0
    %p280 = por %p278, %p279
    %p281 = scmp.ne.s32.totalorder %s273, %s275
    %p282 = scmp.eq.s32.totalorder %s24, 1
    %p283 = por %p281, %p282
    %p284 = scmp.ne.s32.totalorder %s275, %s276
    %p285 = scmp.eq.s32.totalorder %s24, 0
    %p286 = por %p284, %p285
    %p287 = scmp.ne.s32.totalorder %s275, %s276
    %p288 = scmp.eq.s32.totalorder %s25, 1
    %p289 = por %p287, %p288
    %p291 = scmp.ne.s32.totalorder %s276, %s290
    %p292 = scmp.eq.s32.totalorder %s25, 0
    %p293 = por %p291, %p292
    %s295 = sadd.s32 %s294, 1
    %p298 = scmp.eq.s32.totalorder %s19, 1
    %p299 = scmp.ne.s32.totalorder %s294, %s296
    %p300 = scmp.eq.s32.totalorder %s19, 0
    %p301 = por %p299, %p300
    %p302 = scmp.ne.s32.totalorder %s294, %s296
    %p303 = scmp.eq.s32.totalorder %s24, 1
    %p304 = por %p302, %p303
    %p305 = scmp.ne.s32.totalorder %s296, %s297
    %p306 = scmp.eq.s32.totalorder %s24, 0
    %p307 = por %p305, %p306
    %p308 = scmp.ne.s32.totalorder %s296, %s297
    %p309 = scmp.eq.s32.totalorder %s25, 1
    %p310 = por %p308, %p309
    %p312 = scmp.ne.s32.totalorder %s297, %s311
    %p313 = scmp.eq.s32.totalorder %s25, 0
    %p314 = por %p312, %p313
    %s315 = ssub.s32 %s19, %s26
    %p316 = scmp.eq.s32.totalorder %s315, 0
    %s318 = sadd.s32 %s317, 1
    %s319 = scalar_select %p316, %s317, %s318
    %p322 = pneg %p316
    %p323 = scmp.eq.s32.totalorder %s19, 1
    %p324 = por %p322, %p323
    %p325 = scmp.ne.s32.totalorder %s317, %s320
    %p326 = scmp.eq.s32.totalorder %s19, 0
    %p327 = por %p325, %p326
    %p328 = scmp.ne.s32.totalorder %s317, %s320
    %p329 = scmp.eq.s32.totalorder %s24, 1
    %p330 = por %p328, %p329
    %p331 = scmp.ne.s32.totalorder %s320, %s321
    %p332 = scmp.eq.s32.totalorder %s24, 0
    %p333 = por %p331, %p332
    %p334 = scmp.ne.s32.totalorder %s320, %s321
    %p335 = scmp.eq.s32.totalorder %s25, 1
    %p336 = por %p334, %p335
    %p338 = scmp.ne.s32.totalorder %s321, %s337
    %p339 = scmp.eq.s32.totalorder %s25, 0
    %p340 = por %p338, %p339
    %p341 = scmp.le.s32.totalorder 1, %s19
    %p342 = scmp.lt.s32.totalorder %s19, 3
    %p343 = pnand %p341, %p342
    %p344 = pneg %p343
    // Predicated region
    $region9: #{multidiscrete_head.1} parent=5 // pred_check
      _
    $region10: #{multidiscrete_head.1} parent=5 // pred_check_branch
      %346 = sbr.rel (%p343) target = $region12
    $region11: #{multidiscrete_head.1} parent=5 // pred_region
      %s347 = ssub.s32 %s19, 1
      // Predicated region
      $region13: #{multidiscrete_head.1} parent=11 // pred_check
        %p348 = pneg %p118
      $region14: #{multidiscrete_head.1} parent=11 // pred_check_branch
        %350 = sbr.rel (%p348) target = $region16
      $region15: #{multidiscrete_head.1} parent=11 // pred_region
        _
      $region16: #{multidiscrete_head.1} parent=11 // pred_fallthru
        _
      // Predicated region
      $region17: #{multidiscrete_head.1} parent=11 // pred_check
        %p351 = pneg %p139
      $region18: #{multidiscrete_head.1} parent=11 // pred_check_branch
        %353 = sbr.rel (%p351) target = $region20
      $region19: #{multidiscrete_head.1} parent=11 // pred_region
        _
      $region20: #{multidiscrete_head.1} parent=11 // pred_fallthru
        _
      // Predicated region
      $region21: #{multidiscrete_head.1} parent=11 // pred_check
        %p354 = pneg %p160
      $region22: #{multidiscrete_head.1} parent=11 // pred_check_branch
        %356 = sbr.rel (%p354) target = $region24
      $region23: #{multidiscrete_head.1} parent=11 // pred_region
        _
      $region24: #{multidiscrete_head.1} parent=11 // pred_fallthru
        _
      // Predicated region
      $region25: #{multidiscrete_head.1} parent=11 // pred_check
        %p357 = pneg %p181
      $region26: #{multidiscrete_head.1} parent=11 // pred_check_branch
        %359 = sbr.rel (%p357) target = $region28
      $region27: #{multidiscrete_head.1} parent=11 // pred_region
        _
      $region28: #{multidiscrete_head.1} parent=11 // pred_fallthru
        _
      // Predicated region
      $region29: #{multidiscrete_head.1} parent=11 // pred_check
        %p360 = pneg %p202
      $region30: #{multidiscrete_head.1} parent=11 // pred_check_branch
        %362 = sbr.rel (%p360) target = $region32
      $region31: #{multidiscrete_head.1} parent=11 // pred_region
        _
      $region32: #{multidiscrete_head.1} parent=11 // pred_fallthru
        _
      // Predicated region
      $region33: #{multidiscrete_head.1} parent=11 // pred_check
        %p363 = pneg %p223
      $region34: #{multidiscrete_head.1} parent=11 // pred_check_branch
        %365 = sbr.rel (%p363) target = $region36
      $region35: #{multidiscrete_head.1} parent=11 // pred_region
        _
      $region36: #{multidiscrete_head.1} parent=11 // pred_fallthru
        _
      // Predicated region
      $region37: #{multidiscrete_head.1} parent=11 // pred_check
        %p366 = pneg %p244
      $region38: #{multidiscrete_head.1} parent=11 // pred_check_branch
        %368 = sbr.rel (%p366) target = $region40
      $region39: #{multidiscrete_head.1} parent=11 // pred_region
        _
      $region40: #{multidiscrete_head.1} parent=11 // pred_fallthru
        _
      // Predicated region
      $region41: #{multidiscrete_head.1} parent=11 // pred_check
        %p369 = pneg %p265
      $region42: #{multidiscrete_head.1} parent=11 // pred_check_branch
        %371 = sbr.rel (%p369) target = $region44
      $region43: #{multidiscrete_head.1} parent=11 // pred_region
        _
      $region44: #{multidiscrete_head.1} parent=11 // pred_fallthru
        _
      // Predicated region
      $region45: #{multidiscrete_head.1} parent=11 // pred_check
        %p372 = pneg %p286
      $region46: #{multidiscrete_head.1} parent=11 // pred_check_branch
        %374 = sbr.rel (%p372) target = $region48
      $region47: #{multidiscrete_head.1} parent=11 // pred_region
        _
      $region48: #{multidiscrete_head.1} parent=11 // pred_fallthru
        _
      // Predicated region
      $region49: #{multidiscrete_head.1} parent=11 // pred_check
        %p375 = pneg %p307
      $region50: #{multidiscrete_head.1} parent=11 // pred_check_branch
        %377 = sbr.rel (%p375) target = $region52
      $region51: #{multidiscrete_head.1} parent=11 // pred_region
        _
      $region52: #{multidiscrete_head.1} parent=11 // pred_fallthru
        _
    $region12: #{multidiscrete_head.1} parent=5 // pred_fallthru
      _
    %p378 = scmp.lt.s32.totalorder %s19, 2
    // Predicated region
    $region53: #{multidiscrete_head.1} parent=5 // pred_check
      %p379 = pneg %p378
    $region54: #{multidiscrete_head.1} parent=5 // pred_check_branch
      %381 = sbr.rel (%p379) target = $region56
    $region55: #{multidiscrete_head.1} parent=5 // pred_region
      // Predicated region
      $region57: #{multidiscrete_head.1} parent=55 // pred_check
        %p382 = pneg %p39
      $region58: #{multidiscrete_head.1} parent=55 // pred_check_branch
        %384 = sbr.rel (%p382) target = $region60
      $region59: #{multidiscrete_head.1} parent=55 // pred_region
        %p385 = scmp.lt.s32.totalorder %s19, 1
        %s386 = scalar_select %p385, %s19, 1
        %s387 = smul.addr %s386, 8
        %s388 = scalar_lea.vmem %s0, %s387
      $region60: #{multidiscrete_head.1} parent=55 // pred_fallthru
        _
      // Predicated region
      $region61: #{multidiscrete_head.1} parent=55 // pred_check
        %p389 = pneg %p65
      $region62: #{multidiscrete_head.1} parent=55 // pred_check_branch
        %391 = sbr.rel (%p389) target = $region64
      $region63: #{multidiscrete_head.1} parent=55 // pred_region
        %p392 = scmp.lt.s32.totalorder %s19, 1
        %s393 = scalar_select %p392, %s19, 1
        %s394 = smul.addr %s393, 8
        %s395 = scalar_lea.vmem %s1, %s394
      $region64: #{multidiscrete_head.1} parent=55 // pred_fallthru
        _
      // Predicated region
      $region65: #{multidiscrete_head.1} parent=55 // pred_check
        %p396 = pneg %p91
      $region66: #{multidiscrete_head.1} parent=55 // pred_check_branch
        %398 = sbr.rel (%p396) target = $region68
      $region67: #{multidiscrete_head.1} parent=55 // pred_region
        %p399 = scmp.lt.s32.totalorder %s19, 1
        %s400 = scalar_select %p399, %s19, 1
        %s401 = smul.addr %s400, 8
        %s402 = scalar_lea.vmem %s2, %s401
      $region68: #{multidiscrete_head.1} parent=55 // pred_fallthru
        _
    $region56: #{multidiscrete_head.1} parent=5 // pred_fallthru
      _
    %p403 = scmp.le.s32.totalorder 1, %s19
    %p404 = scmp.lt.s32.totalorder %s19, 3
    %p405 = pnand %p403, %p404
    %p406 = pneg %p405
    // Predicated region
    $region69: #{multidiscrete_head.1} parent=5 // pred_check
      _
    $region70: #{multidiscrete_head.1} parent=5 // pred_check_branch
      %408 = sbr.rel (%p405) target = $region72
    $region71: #{multidiscrete_head.1} parent=5 // pred_region
      %s409 = ssub.s32 %s19, 1
      %p410 = scmp.lt.s32.totalorder %s24, 1
      %s411 = scalar_select %p410, %s24, 1
      %s412 = smul.addr %s411, 8
      %s413 = scalar_lea.vmem %s0, %s412
      %p414 = pneg %p45
      %p415 = pneg %p42
      %p416 = scmp.lt.s32.totalorder %s24, 1
      %s417 = scalar_select %p416, %s24, 1
      %s418 = smul.addr %s417, 8
      %s419 = scalar_lea.vmem %s1, %s418
      %p420 = pneg %p71
      %p421 = pneg %p68
      %p422 = scmp.lt.s32.totalorder %s24, 1
      %s423 = scalar_select %p422, %s24, 1
      %s424 = smul.addr %s423, 8
      %s425 = scalar_lea.vmem %s2, %s424
      %p426 = pneg %p97
      %p427 = pneg %p94
      %p428 = pneg %p118
      %p429 = pneg %p115
      %p430 = pneg %p139
      %p431 = pneg %p136
      %p432 = pneg %p160
      %p433 = pneg %p157
      %p434 = pneg %p181
      %p435 = pneg %p178
      %p436 = pneg %p202
      %p437 = pneg %p199
      %p438 = pneg %p223
      %p439 = pneg %p220
      %p440 = pneg %p244
      %p441 = pneg %p241
      %p442 = pneg %p265
      %p443 = pneg %p262
      %p444 = pneg %p286
      %p445 = pneg %p283
      %p446 = pneg %p307
      %p447 = pneg %p304
      %p448 = pneg %p333
      %p449 = pneg %p330
      %p450 = scmp.lt.s32.totalorder %s24, 1
      %s451 = scalar_select %p450, %s24, 1
      %s452 = smul.addr %s451, 8
      %s453 = scalar_lea.vmem %s13, %s452
      %p454 = scmp.lt.s32.totalorder %s24, 1
      %s455 = scalar_select %p454, %s24, 1
      %s456 = smul.addr %s455, 8
      %s457 = scalar_lea.vmem %s0, %s456
      %p458 = scmp.lt.s32.totalorder %s24, 1
      %s459 = scalar_select %p458, %s24, 1
      %s460 = smul.addr %s459, 8
      %s461 = scalar_lea.vmem %s1, %s460
      %p462 = scmp.lt.s32.totalorder %s24, 1
      %s463 = scalar_select %p462, %s24, 1
      %s464 = smul.addr %s463, 8
      %s465 = scalar_lea.vmem %s2, %s464
      %p466 = scmp.lt.s32.totalorder %s24, 1
      %s467 = scalar_select %p466, %s24, 1
      %s468 = smul.addr %s467, 8
      %s469 = scalar_lea.vmem %s13, %s468
      %v470 = vld [vmem:[%s457] sm:$0xff]
      %v471 = vld [vmem:[%s3] sm:$0xff]
      %v472 = vld [vmem:[%s3 + $0x8] sm:$0xff]
      %v473 = vld [vmem:[%s4] sm:$0x1]
      %v475 = vperm.slane %v473, 0
      %vm477 = vcmask 130048
      %v479 = vsel %vm477, %v470, 0
      %481 = vmatpush.msra.mxu0 0.0
      %482 = vmatpush.msra.mxu0 0.0
      %483 = vmatpush.msra.mxu0 0.0
      %484 = vmatpush.msra.mxu0 0.0
      %485 = vmatpush.msra.mxu0 0.0
      %486 = vmatpush.msra.mxu0 0.0
      %487 = vmatpush.msra.mxu0 0.0
      %488 = vmatpush.msra.mxu0 0.0
      %489 = vmatpush.msra.mxu0 0.0
      %490 = vmatpush.msra.mxu0 0.0
      %491 = vmatpush.msra.mxu0 0.0
      %492 = vmatpush.msra.mxu0 0.0
      %493 = vmatpush.msra.mxu0 0.0
      %494 = vmatpush.msra.mxu0 0.0
      %495 = vmatpush.msra.mxu0 %v472
      %496 = vmatpush.msra.mxu0 %v471
      %497 = vmatmul.f32.gmra.mxu0 %v479
      %v498 = vpop.f32.mrf.mxu0
      %v499 = vadd.f32 %v475, %v498
      %500 = vdwg.mxu0
      %v501 = vxor.u32 %v499, 2147483648
      %v502 = vmul.f32 %v501, 1.442695
      %v503 = vpow.pop %v502
      %v504 = vadd.f32 %v503, 1.0
      %v505 = vrcp.pop %v504
      %v506 = vmul.f32 %v504, %v505
      %v507 = vsub.f32 1.0, %v506
      %v508 = vmul.f32 %v505, %v507
      %v509 = vadd.f32 %v505, %v508
      %vm510 = vweird.f32 %v504
      %vm511 = vweird.f32 %v505
      %vm512 = vmor %vm510, %vm511
      %v513 = vsel %vm512, %v505, %v509
      %v514 = vand.u32 2147483647, %v504
      %vm515 = vcmp.eq.f32.partialorder %v514, 8.507059e+37
      %v516 = vand.u32 %v504, 2147483648
      %v517 = vor.u32 1.1754944e-38, %v516
      %v518 = vsel %vm515, %v517, %v513
      %v519 = vmul.f32 1.0, %v518
      %v520 = vld [vmem:[%s461] sm:$0xff]
      %v521 = vld [vmem:[%s5] sm:$0x3]
      %v522 = vld [vmem:[%s465] sm:$0xff]
      %v523 = vld [vmem:[%s6] sm:$0x1]
      %525 = vset.pattern.permute.xlu0 0
      %526 = vperm.xlu0 %525, %v522
      %v527 = vpop.permute.xlu0 %526
      %v530 = vperm.slane %v523, 0
      %v532 = vmul.f32 %v527, %v530
      %vm533 = vcmask 15360
      %v535 = vsel %vm533, %v520, 0
      %vm537 = vcmask 1041408
      %v539 = vsel %vm537, %v521, 0
      %541 = vmatpush.msra.mxu0 0.0
      %542 = vmatpush.msra.mxu0 0.0
      %543 = vmatpush.msra.mxu0 0.0
      %544 = vmatpush.msra.mxu0 0.0
      %545 = vmatpush.msra.mxu0 0.0
      %546 = vmatpush.msra.mxu0 0.0
      %547 = vmatpush.msra.mxu0 0.0
      %548 = vmatpush.msra.mxu0 0.0
      %549 = vmatpush.msra.mxu0 0.0
      %550 = vmatpush.msra.mxu0 0.0
      %551 = vmatpush.msra.mxu0 0.0
      %552 = vmatpush.msra.mxu0 0.0
      %553 = vmatpush.msra.mxu0 0.0
      %554 = vmatpush.msra.mxu0 0.0
      %555 = vmatpush.msra.mxu0 0.0
      %556 = vmatpush.msra.mxu0 %v539
      %557 = vmatmul.f32.gmra.mxu0 %v535
      %v558 = vpop.f32.mrf.mxu0
      %v559 = vadd.f32 %v532, %v558
      %560 = vdwg.mxu0
      %v561 = vld [vmem:[%s7] sm:$0x1]
      %v563 = vperm.slane %v561, 0
      %v565 = vadd.f32 %v559, %v563
      %v566 = vxor.u32 %v565, 2147483648
      %v567 = vmul.f32 %v566, 1.442695
      %v568 = vpow.pop %v567
      %v569 = vadd.f32 %v568, 1.0
      %v570 = vrcp.pop %v569
      %v571 = vmul.f32 %v569, %v570
      %v572 = vsub.f32 1.0, %v571
      %v573 = vmul.f32 %v570, %v572
      %v574 = vadd.f32 %v570, %v573
      %vm575 = vweird.f32 %v569
      %vm576 = vweird.f32 %v570
      %vm577 = vmor %vm575, %vm576
      %v578 = vsel %vm577, %v570, %v574
      %v579 = vand.u32 2147483647, %v569
      %vm580 = vcmp.eq.f32.partialorder %v579, 8.507059e+37
      %v581 = vand.u32 %v569, 2147483648
      %v582 = vor.u32 1.1754944e-38, %v581
      %v583 = vsel %vm580, %v582, %v578
      %v584 = vmul.f32 1.0, %v583
      %v585 = vmul.f32 %v519, %v584
      %v586 = vld [vmem:[%s8] sm:$0xff]
      %v587 = vld [vmem:[%s8 + $0x8] sm:$0xff]
      %v588 = vld [vmem:[%s8 + $0x10] sm:$0xff]
      %v589 = vld [vmem:[%s8 + $0x18] sm:$0xff]
      %v590 = vld [vmem:[%s8 + $0x20] sm:$0xff]
      %v591 = vld [vmem:[%s8 + $0x28] sm:$0xff]
      %v592 = vld [vmem:[%s8 + $0x30] sm:$0xff]
      %v593 = vld [vmem:[%s8 + $0x38] sm:$0xff]
      %v594 = vld [vmem:[%s9] sm:$0x1]
      %v596 = vperm.slane %v594, 0
      %vm598 = vcmask 523264
      %v600 = vsel %vm598, %v585, 0
      %602 = vmatpush.msra.mxu0 0.0
      %603 = vmatpush.msra.mxu0 0.0
      %604 = vmatpush.msra.mxu0 0.0
      %605 = vmatpush.msra.mxu0 0.0
      %606 = vmatpush.msra.mxu0 0.0
      %607 = vmatpush.msra.mxu0 0.0
      %608 = vmatpush.msra.mxu0 0.0
      %609 = vmatpush.msra.mxu0 0.0
      %610 = vmatpush.msra.mxu0 %v593
      %611 = vmatpush.msra.mxu0 %v592
      %612 = vmatpush.msra.mxu0 %v591
      %613 = vmatpush.msra.mxu0 %v590
      %614 = vmatpush.msra.mxu0 %v589
      %615 = vmatpush.msra.mxu0 %v588
      %616 = vmatpush.msra.mxu0 %v587
      %617 = vmatpush.msra.mxu0 %v586
      %618 = vmatmul.f32.gmra.mxu0 %v600
      %v619 = vpop.f32.mrf.mxu0
      %v620 = vadd.f32 %v596, %v619
      %621 = vdwg.mxu0
      %v622 = vmax.f32 %v620, 0.0
      %v623 = vld [vmem:[%s10] sm:$0xff]
      %v624 = vld [vmem:[%s10 + $0x8] sm:$0xff]
      %v625 = vld [vmem:[%s10 + $0x10] sm:$0xff]
      %v626 = vld [vmem:[%s10 + $0x18] sm:$0xff]
      %v627 = vld [vmem:[%s10 + $0x20] sm:$0xff]
      %v628 = vld [vmem:[%s10 + $0x28] sm:$0xff]
      %v629 = vld [vmem:[%s10 + $0x30] sm:$0xff]
      %v630 = vld [vmem:[%s10 + $0x38] sm:$0xff]
      %v631 = vld [vmem:[%s11] sm:$0x1]
      %v633 = vperm.slane %v631, 0
      %v636 = vsel %vm598, %v622, 0
      %638 = vmatpush.msra.mxu0 0.0
      %639 = vmatpush.msra.mxu0 0.0
      %640 = vmatpush.msra.mxu0 0.0
      %641 = vmatpush.msra.mxu0 0.0
      %642 = vmatpush.msra.mxu0 0.0
      %643 = vmatpush.msra.mxu0 0.0
      %644 = vmatpush.msra.mxu0 0.0
      %645 = vmatpush.msra.mxu0 0.0
      %646 = vmatpush.msra.mxu0 %v630
      %647 = vmatpush.msra.mxu0 %v629
      %648 = vmatpush.msra.mxu0 %v628
      %649 = vmatpush.msra.mxu0 %v627
      %650 = vmatpush.msra.mxu0 %v626
      %651 = vmatpush.msra.mxu0 %v625
      %652 = vmatpush.msra.mxu0 %v624
      %653 = vmatpush.msra.mxu0 %v623
      %654 = vmatmul.f32.gmra.mxu0 %v636
      %v655 = vpop.f32.mrf.mxu0
      %v656 = vadd.f32 %v633, %v655
      %657 = vdwg.mxu0
      %vm658 = vcmask 72704
      %v659 = vsel %vm658, %v656, -inf
      %660 = vmax.xlane.f32.xlu0 %v659
      %v661 = vpop.xlane.xlu0 %660
      %v662 = vsub.f32 %v656, %v661
      %v663 = vmul.f32 %v662, 1.442695
      %v664 = vpow.pop %v663
      %v665 = vld [vmem:[%s12] sm:$0xff]
      %v666 = vld [vmem:[%s12 + $0x8] sm:$0x1]
      %v668 = vsel %vm658, %v664, 0
      %vm670 = vcmask 1040384
      %v672 = vsel %vm670, %v666, 0
      %674 = vmatpush.msra.mxu0 0.0
      %675 = vmatpush.msra.mxu0 0.0
      %676 = vmatpush.msra.mxu0 0.0
      %677 = vmatpush.msra.mxu0 0.0
      %678 = vmatpush.msra.mxu0 0.0
      %679 = vmatpush.msra.mxu0 0.0
      %680 = vmatpush.msra.mxu0 0.0
      %681 = vmatpush.msra.mxu0 0.0
      %682 = vmatpush.msra.mxu0 0.0
      %683 = vmatpush.msra.mxu0 0.0
      %684 = vmatpush.msra.mxu0 0.0
      %685 = vmatpush.msra.mxu0 0.0
      %686 = vmatpush.msra.mxu0 0.0
      %687 = vmatpush.msra.mxu0 0.0
      %688 = vmatpush.msra.mxu0 %v672
      %689 = vmatpush.msra.mxu0 %v665
      %690 = vmatmul.f32.gmra.mxu0 %v668
      %v691 = vpop.f32.mrf.mxu0
      %v692 = vadd.f32 0.0, %v691
      %693 = vdwg.mxu0
      %v694 = vlog2.pop %v692
      %v695 = vmul.f32 %v694, 0.6931472
      %v696 = vsub.f32 %v662, %v695
      %697 = vst.msk [vmem:[%s469] sm:$0xff] %vm658, %v696
      %p698 = scmp.lt.s32.totalorder %s24, 1
      %s699 = scalar_select %p698, %s24, 1
      %s700 = smul.addr %s699, 8
      %s701 = scalar_lea.vmem %s13, %s700
      // Predicated region
      $region73: #{multidiscrete_head.1} parent=71 // pred_check
        %p702 = pneg %p330
      $region74: #{multidiscrete_head.1} parent=71 // pred_check_branch
        %704 = sbr.rel (%p702) target = $region76
      $region75: #{multidiscrete_head.1} parent=71 // pred_region
        _
      $region76: #{multidiscrete_head.1} parent=71 // pred_fallthru
        _
    $region72: #{multidiscrete_head.1} parent=5 // pred_fallthru
      _
    %p705 = scmp.le.s32.totalorder 2, %s19
    // Predicated region
    $region77: #{multidiscrete_head.1} parent=5 // pred_check
      %p706 = pneg %p705
    $region78: #{multidiscrete_head.1} parent=5 // pred_check_branch
      %708 = sbr.rel (%p706) target = $region80
    $region79: #{multidiscrete_head.1} parent=5 // pred_region
      %s709 = ssub.s32 %s19, 2
      // Predicated region
      $region81: #{multidiscrete_head.1} parent=79 // pred_check
        %p710 = pneg %p336
      $region82: #{multidiscrete_head.1} parent=79 // pred_check_branch
        %712 = sbr.rel (%p710) target = $region84
      $region83: #{multidiscrete_head.1} parent=79 // pred_region
        %p713 = scmp.lt.s32.totalorder %s25, 1
        %s714 = scalar_select %p713, %s25, 1
        %s715 = smul.addr %s714, 8
        %s716 = scalar_lea.vmem %s13, %s715
      $region84: #{multidiscrete_head.1} parent=79 // pred_fallthru
        _
    $region80: #{multidiscrete_head.1} parent=5 // pred_fallthru
      _
  $region6: #{multidiscrete_head.1} parent=0 // loop_footer
    %s23 = sadd.s32 1, %s19
  $region7: #{multidiscrete_head.1} parent=0 // loop_footer_branch
    %18 = sbr.rel target = $region3
  $region8: #{multidiscrete_head.1} parent=0 // loop_exit
    _

</llo_original>
